<compile_context>
chip_gen: v5e
topology: v5e:2x2
jax: 0.10.0
libtpu: 0.0.40
codegen_flags: <defaults>
</compile_context>

<pallas_src>
import functools

import jax
import jax.numpy as jnp
from jax.experimental import pallas as pl
from jax.experimental.pallas import tpu as pltpu


def _dice_kernel(pred_ref, tgt_ref, out_ref, *, inv_denom, gamma, hw, tile_hw,
                 t_in, num_t, need_mask):
    ti = pl.program_id(2)

    @pl.when(ti == 0)
    def _():
        out_ref[...] = jnp.zeros_like(out_ref)

    p = pred_ref[...].astype(jnp.float32)        # (C, TILE) logits
    tgt = tgt_ref[...].astype(jnp.int32)         # (1, TILE) class ids
    C, TILE = p.shape

    # Softmax probability of the target class in a single pass over (C, TILE):
    #   m     = max_c p                    (stabilizer)
    #   s     = sum_c exp(p_c - m)
    #   p_tgt = target-class logit, gathered with a masked max (avoids a second
    #           (C, TILE) pass over exp(p - m))
    #   tp    = exp(p_tgt - m) / s
    m = jnp.max(p, axis=0, keepdims=True)                        # (1, TILE)
    s = jnp.sum(jnp.exp(p - m), axis=0, keepdims=True)           # (1, TILE)
    ch = jax.lax.broadcasted_iota(jnp.int32, (C, TILE), 0)
    p_tgt = jnp.max(jnp.where(ch == tgt, p, -jnp.inf),
                    axis=0, keepdims=True)                       # (1, TILE)
    # EUP approximate reciprocal keeps the divide off the VALU slots.
    tp = jnp.exp(p_tgt - m) * pl.reciprocal(s, approx=True)      # (1, TILE)

    # Tversky with one-hot target & weight=None: fn == fp == 1 - tp, so for any
    # alpha: 1 - (tp + smooth)/(tp + a*fn + (1-a)*fp + smooth) = (1-tp)/(1+smooth)
    # (assumes labels in [0, C), same as torch one_hot).
    loss = (1.0 - tp) * inv_denom
    if gamma != 1.0:                             # static: gamma is a constant
        loss = jnp.power(loss, gamma)

    if need_mask:
        # Ragged H*W: mask ONLY the last pixel tile; all other tiles take the
        # unmasked (iota/compare/select-free) accumulate path.
        tile_idx = pl.program_id(1) * t_in + ti
        is_last = tile_idx == (num_t - 1)

        @pl.when(is_last)
        def _():
            col = (jax.lax.broadcasted_iota(jnp.int32, loss.shape, 1)
                   + tile_idx * tile_hw)
            # Mask BEFORE the sum: OOB columns may hold exp(garbage) = inf/NaN.
            out_ref[...] += jnp.sum(jnp.where(col < hw, loss, 0.0))

        @pl.when(jnp.logical_not(is_last))
        def _():
            out_ref[...] += jnp.sum(loss)
    else:
        out_ref[...] += jnp.sum(loss)


def _choose_tile(C, HW, pred_itemsize, tgt_itemsize, *, target_dma_bytes,
                 vmem_budget_bytes):
    """Lane-aligned pixel-tile width giving ~target_dma_bytes per logits DMA
    while keeping the double-buffered working set under vmem_budget_bytes
    (safe on v5e/v6e/v7x)."""
    c_pad = ((max(C, 1) + 7) // 8) * 8           # sublane padding of the block
    per_px = (2 * c_pad * pred_itemsize          # 2x-buffered logits block
              + 2 * 8 * tgt_itemsize             # 2x-buffered target block
              + 3 * c_pad * 4)                   # in-kernel f32 temporaries
    tile = min(target_dma_bytes // (c_pad * pred_itemsize),
               vmem_budget_bytes // per_px,
               HW)
    if tile < HW:
        tile = max(128, (tile // 128) * 128)
        # Prefer a 128-multiple tile that divides H*W exactly (removes the
        # ragged-tile mask entirely) if it costs at most ~2x more grid steps.
        if HW % tile != 0 and HW % 128 == 0:
            for cand in range(tile, 127, -128):
                if HW % cand == 0:
                    if 2 * cand >= tile:
                        tile = cand
                    break
    return int(tile)


def dice_loss(predictions, target, *, alpha=0.5, gamma=1.0, smooth=1.0,
              target_dma_bytes=2 * 1024 * 1024,
              vmem_budget_bytes=24 * 1024 * 1024):
    """predictions: (N, C, H, W) logits; target: (N, H, W) integer class ids.

    Fast path: the kernel upcasts internally, so bf16 logits and int8 targets
    can be passed directly (cuts HBM traffic ~2.2x on bandwidth-bound v5e/v6e).

    `alpha` is accepted for API parity but cancels analytically when
    weight is None (fn == fp == 1 - tp), exactly as in the reference math.
    Labels must lie in [0, C).
    """
    del alpha  # cancels analytically for weight=None (see kernel comment)
    N, C, H, W = predictions.shape
    HW = H * W
    P = N * HW

    pred3 = predictions.reshape(N, C, HW)            # free reshape (contiguous)
    tgt = jnp.squeeze(target).reshape(N, 1, HW)      # mirrors torch .squeeze()
    if not jnp.issubdtype(tgt.dtype, jnp.integer):
        tgt = tgt.astype(jnp.int32)

    tile = _choose_tile(C, HW,
                        jnp.dtype(predictions.dtype).itemsize,
                        jnp.dtype(tgt.dtype).itemsize,
                        target_dma_bytes=int(target_dma_bytes),
                        vmem_budget_bytes=int(vmem_budget_bytes))
    num_t = -(-HW // tile)
    need_mask = (HW % tile) != 0

    # Second *parallel* grid axis over pixel-tile groups: lets the v7x megacore
    # split work even when N is 1 / odd (no-op on single-core v5e/v6e).
    t_out = 2 if (num_t >= 2 and num_t % 2 == 0) else 1
    t_in = num_t // t_out

    kern = functools.partial(
        _dice_kernel,
        inv_denom=1.0 / (1.0 + float(smooth)),
        gamma=float(gamma),
        hw=HW,
        tile_hw=tile,
        t_in=t_in,
        num_t=num_t,
        need_mask=need_mask)

    partials = pl.pallas_call(
        kern,
        out_shape=jax.ShapeDtypeStruct((N, t_out, 1, 128), jnp.float32),
        grid_spec=pltpu.PrefetchScalarGridSpec(
            num_scalar_prefetch=0,
            grid=(N, t_out, t_in),
            in_specs=[
                pl.BlockSpec((None, C, tile),
                             lambda n, to, ti: (n, 0, to * t_in + ti)),
                pl.BlockSpec((None, 1, tile),
                             lambda n, to, ti: (n, 0, to * t_in + ti)),
            ],
            out_specs=pl.BlockSpec((None, None, 1, 128),
                                   lambda n, to, ti: (n, to, 0, 0)),
        ),
        compiler_params=pltpu.CompilerParams(
            dimension_semantics=("parallel", "parallel", "arbitrary"),
            vmem_limit_bytes=32 * 1024 * 1024),
    )(pred3, tgt)

    # Tiny (N * t_out)-way reduce + mean over all N*H*W pixels in plain JAX.
    return jnp.sum(partials[:, :, 0, 0]) / jnp.float32(P)


def _dice_loss_ref(predictions, target, *, alpha=0.5, gamma=1.0, smooth=1.0):
    """Pure-JAX reference (mirrors the PyTorch FocalTverskyLoss forward)."""
    probs = jax.nn.softmax(predictions.astype(jnp.float32), axis=1)
    y = jax.nn.one_hot(jnp.squeeze(target), predictions.shape[1],
                       dtype=jnp.float32)
    y = jnp.transpose(y, (0, 3, 1, 2))
    tp = (y * probs).sum(axis=1)
    fn = (y * (1.0 - probs)).sum(axis=1)
    fp = ((1.0 - y) * probs).sum(axis=1)
    tversky = (tp + smooth) / (tp + alpha * fn + (1.0 - alpha) * fp + smooth)
    return jnp.mean((1.0 - tversky) ** gamma)


if __name__ == "__main__":
    key = jax.random.PRNGKey(0)
    k1, k2, k3, k4 = jax.random.split(key, 4)

    # Case 1: nominal small shape (single full-width tile, no mask).
    N, C, H, W = 2, 4, 16, 16
    predictions = jax.random.normal(k1, (N, C, H, W), dtype=jnp.float32)
    target = jax.random.randint(k2, (N, H, W), 0, C, dtype=jnp.int32)

    out = dice_loss(predictions, target, gamma=1.0, smooth=1.0)
    out = jax.block_until_ready(out)
    ref = _dice_loss_ref(predictions, target, alpha=0.5, gamma=1.0, smooth=1.0)
    assert jnp.allclose(out, ref, atol=1e-3, rtol=1e-3), (out, ref)

    # Case 2: ragged H*W with a tiny DMA budget to exercise the multi-tile
    # grid, the parallel pixel-group axis and the last-tile-only mask path.
    N2, C2, H2, W2 = 2, 4, 12, 12                 # H*W = 144 (not 128-aligned)
    pred2 = jax.random.normal(k3, (N2, C2, H2, W2), dtype=jnp.float32)
    tgt2 = jax.random.randint(k4, (N2, H2, W2), 0, C2, dtype=jnp.int32)

    out2 = dice_loss(pred2, tgt2, gamma=1.0, smooth=1.0,
                     target_dma_bytes=128 * 4 * 8)   # force 128-px tiles
    out2 = jax.block_until_ready(out2)
    ref2 = _dice_loss_ref(pred2, tgt2, alpha=0.5, gamma=1.0, smooth=1.0)
    assert jnp.allclose(out2, ref2, atol=1e-3, rtol=1e-3), (out2, ref2)

    print("KERNEL_OK")
</pallas_src>

<mosaic_0001>
module attributes {stable_mosaic.version = 11 : i64} {
  func.func @_dice_kernel(%arg0: i32, %arg1: i32, %arg2: i32, %arg3: memref<1x4x256xf32, #tpu.memory_space<vmem>>, %arg4: memref<1x1x256xi32, #tpu.memory_space<vmem>>, %arg5: memref<1x1x1x128xf32, #tpu.memory_space<vmem>>) attributes {dimension_semantics = [#tpu.dimension_semantics<parallel>, #tpu.dimension_semantics<parallel>, #tpu.dimension_semantics<arbitrary>], iteration_bounds = array<i64: 2, 1, 1>, scalar_prefetch = 0 : i64, scratch_operands = 0 : i64, tpu.core_type = #tpu.core_type<tc>, window_params = [{transform_indices = @transform_0, window_bounds = array<i64: 1, 4, 256>}, {transform_indices = @transform_1, window_bounds = array<i64: 1, 1, 256>}, {transform_indices = @transform_2, window_bounds = array<i64: 1, 1, 1, 128>}]} {
    %c0_i32 = arith.constant 0 : i32
    %0 = arith.cmpi eq, %arg2, %c0_i32 : i32
    %1 = arith.extui %0 : i1 to i32
    %c0_i32_0 = arith.constant 0 : i32
    %2 = arith.cmpi ne, %1, %c0_i32_0 : i32
    scf.if %2 {
      %cst_20 = arith.constant 0.000000e+00 : f32
      %40 = vector.broadcast %cst_20 : f32 to vector<1x128xf32>
      %c0_21 = arith.constant 0 : index
      %c0_22 = arith.constant 0 : index
      %c0_23 = arith.constant 0 : index
      %c0_24 = arith.constant 0 : index
      %41 = vector.load %arg5[%c0_21, %c0_22, %c0_23, %c0_24] : memref<1x1x1x128xf32, #tpu.memory_space<vmem>>, vector<1x1x1x128xf32>
      %42 = vector.shape_cast %41 : vector<1x1x1x128xf32> to vector<1x128xf32>
      %43 = vector.shape_cast %40 : vector<1x128xf32> to vector<1x1x1x128xf32>
      tpu.vector_store %arg5[%c0_21, %c0_22, %c0_23, %c0_24], %43 {strides = array<i32>} : memref<1x1x1x128xf32, #tpu.memory_space<vmem>>, vector<1x1x1x128xf32>,
    } else {
    }
    %c0 = arith.constant 0 : index
    %c0_1 = arith.constant 0 : index
    %c0_2 = arith.constant 0 : index
    %3 = vector.load %arg3[%c0, %c0_1, %c0_2] : memref<1x4x256xf32, #tpu.memory_space<vmem>>, vector<1x4x256xf32>
    %4 = vector.shape_cast %3 : vector<1x4x256xf32> to vector<4x256xf32>
    %c0_3 = arith.constant 0 : index
    %c0_4 = arith.constant 0 : index
    %c0_5 = arith.constant 0 : index
    %5 = vector.load %arg4[%c0_3, %c0_4, %c0_5] : memref<1x1x256xi32, #tpu.memory_space<vmem>>, vector<1x1x256xi32>
    %6 = vector.shape_cast %5 : vector<1x1x256xi32> to vector<1x256xi32>
    %cst = arith.constant dense<0xFF800000> : vector<256xf32>
    %7 = vector.multi_reduction <maximumf>, %4, %cst [0] : vector<4x256xf32> to vector<256xf32>
    %8 = vector.shape_cast %7 : vector<256xf32> to vector<1x256xf32>
    %9 = vector.broadcast %8 : vector<1x256xf32> to vector<4x256xf32>
    %10 = arith.subf %4, %9 : vector<4x256xf32>
    %11 = math.exp %10 : vector<4x256xf32>
    %cst_6 = arith.constant dense<0.000000e+00> : vector<256xf32>
    %12 = vector.multi_reduction <add>, %11, %cst_6 [0] : vector<4x256xf32> to vector<256xf32>
    %13 = vector.shape_cast %12 : vector<256xf32> to vector<1x256xf32>
    %14 = tpu.iota {dimensions = array<i32: 0>} : vector<4x256xi32>
    %15 = vector.broadcast %6 : vector<1x256xi32> to vector<4x256xi32>
    %16 = arith.cmpi eq, %14, %15 : vector<4x256xi32>
    %cst_7 = arith.constant 0xFF800000 : f32
    %17 = vector.broadcast %cst_7 : f32 to vector<4x256xf32>
    %18 = arith.select %16, %4, %17 : vector<4x256xi1>, vector<4x256xf32>
    %cst_8 = arith.constant dense<0xFF800000> : vector<256xf32>
    %19 = vector.multi_reduction <maximumf>, %18, %cst_8 [0] : vector<4x256xf32> to vector<256xf32>
    %20 = vector.shape_cast %19 : vector<256xf32> to vector<1x256xf32>
    %21 = arith.subf %20, %8 : vector<1x256xf32>
    %22 = math.exp %21 : vector<1x256xf32>
    %23 = tpu.reciprocal %13 {approx = true} : vector<1x256xf32> -> vector<1x256xf32>
    %24 = arith.mulf %22, %23 : vector<1x256xf32>
    %cst_9 = arith.constant 1.000000e+00 : f32
    %25 = vector.broadcast %cst_9 : f32 to vector<1x256xf32>
    %26 = arith.subf %25, %24 : vector<1x256xf32>
    %cst_10 = arith.constant 5.000000e-01 : f32
    %27 = vector.broadcast %cst_10 : f32 to vector<1x256xf32>
    %28 = arith.mulf %26, %27 : vector<1x256xf32>
    %c0_11 = arith.constant 0 : index
    %c0_12 = arith.constant 0 : index
    %c0_13 = arith.constant 0 : index
    %c0_14 = arith.constant 0 : index
    %29 = vector.load %arg5[%c0_11, %c0_12, %c0_13, %c0_14] : memref<1x1x1x128xf32, #tpu.memory_space<vmem>>, vector<1x1x1x128xf32>
    %30 = vector.shape_cast %29 : vector<1x1x1x128xf32> to vector<1x128xf32>
    %31 = vector.shape_cast %28 : vector<1x256xf32> to vector<1x1x256xf32>
    %cst_15 = arith.constant dense<0.000000e+00> : vector<1xf32>
    %32 = vector.multi_reduction <add>, %31, %cst_15 [1, 2] : vector<1x1x256xf32> to vector<1xf32>
    %33 = vector.shape_cast %32 : vector<1xf32> to vector<1x1x1xf32>
    %34 = vector.extract %33[0, 0, 0] : f32 from vector<1x1x1xf32>
    %35 = vector.broadcast %34 : f32 to vector<1x128xf32>
    %36 = arith.addf %30, %35 : vector<1x128xf32>
    %c0_16 = arith.constant 0 : index
    %c0_17 = arith.constant 0 : index
    %c0_18 = arith.constant 0 : index
    %c0_19 = arith.constant 0 : index
    %37 = vector.load %arg5[%c0_16, %c0_17, %c0_18, %c0_19] : memref<1x1x1x128xf32, #tpu.memory_space<vmem>>, vector<1x1x1x128xf32>
    %38 = vector.shape_cast %37 : vector<1x1x1x128xf32> to vector<1x128xf32>
    %39 = vector.shape_cast %36 : vector<1x128xf32> to vector<1x1x1x128xf32>
    tpu.vector_store %arg5[%c0_16, %c0_17, %c0_18, %c0_19], %39 {strides = array<i32>} : memref<1x1x1x128xf32, #tpu.memory_space<vmem>>, vector<1x1x1x128xf32>,
    return
  }
  func.func @transform_0(%arg0: i32, %arg1: i32, %arg2: i32) -> (i32, i32, i32) {
    %c1_i32 = arith.constant 1 : i32
    %0 = arith.muli %arg1, %c1_i32 : i32
    %1 = arith.addi %0, %arg2 : i32
    %c0_i32 = arith.constant 0 : i32
    %c0_i32_0 = arith.constant 0 : i32
    return %arg0, %c0_i32, %1 : i32, i32, i32
  }
  func.func @transform_1(%arg0: i32, %arg1: i32, %arg2: i32) -> (i32, i32, i32) {
    %c1_i32 = arith.constant 1 : i32
    %0 = arith.muli %arg1, %c1_i32 : i32
    %1 = arith.addi %0, %arg2 : i32
    %c0_i32 = arith.constant 0 : i32
    %c0_i32_0 = arith.constant 0 : i32
    return %arg0, %c0_i32, %1 : i32, i32, i32
  }
  func.func @transform_2(%arg0: i32, %arg1: i32, %arg2: i32) -> (i32, i32, i32, i32) {
    %c0_i32 = arith.constant 0 : i32
    %c0_i32_0 = arith.constant 0 : i32
    %c0_i32_1 = arith.constant 0 : i32
    return %arg0, %arg1, %c0_i32, %c0_i32_0 : i32, i32, i32, i32
  }
}

</mosaic_0001>

<llo_original>
// kernel: tpu_custom_call.1
$region0: #{tpu_custom_call.1}
  #allocation0 [shape = 'u32[]', space=smem, size = 0x4, offset = 0x4, fixed_abs, tag = 'smem constant byte address 0x4 - core index']
  #allocation1 [shape = 'u32[72,128]{1,0:T(1,128)}', space=vmem, size = 0x9000, scoped, tag = 'internal scratch']
  %s0 = inlined_call_operand.hbm [shape: f32[2,4,256], index: 0, kind: input, shape index: {}]
  %s1 = inlined_call_operand.hbm [shape: s32[2,1,256], index: 1, kind: input, shape index: {}]
  %s2 = inlined_call_operand.hbm [shape: f32[2,1,1,128], index: 2, kind: output, shape index: {}]
  %s3 = sld [smem:[#allocation0]]
  $region53: #{tpu_custom_call.1} parent=0
    _
  %s5 = ssub.s32 1, %s3
  %s6 = scalar_select 0, %s5, %s3
  $region1: #{tpu_custom_call.1} parent=0
    #allocation2 [shape = 'u8[8192]{0}', space=vmem, size = 0x2000, scoped, tag = 'input window, operand 0']
    #allocation3 [shape = 's32[2]{0}', space=sflag, size = 0x8, scoped, tag = 'scoped memory for tpu_custom_call.1']
    #allocation4 [shape = 's32[2]{0}', space=sflag, size = 0x8, scoped, tag = 'scoped memory for tpu_custom_call.1']
    #allocation5 [shape = 'u8[2048]{0}', space=vmem, size = 0x800, scoped, tag = 'input window, operand 1']
    #allocation6 [shape = 's32[2]{0}', space=sflag, size = 0x8, scoped, tag = 'scoped memory for tpu_custom_call.1']
    #allocation7 [shape = 'u8[1024]{0}', space=vmem, size = 0x400, scoped, tag = 'output window, operand 0']
    %7 = vsyncpa [#allocation3], 0
    %s8 = scalar_lea.sflag [#allocation3], 1
    %9 = vsyncpa %s8, 0
    %10 = vsyncpa [#allocation6], 0
    %s11 = scalar_lea.sflag [#allocation6], 1
    %12 = vsyncpa %s11, 0
    %13 = vsyncpa [#allocation4], 0
    %s14 = scalar_lea.sflag [#allocation4], 1
    %15 = vsyncpa %s14, 0
    loop: start=0, step=1, limit=4
    $region2: #{tpu_custom_call.1} parent=1 // loop_pre_header
      _
    $region3: #{tpu_custom_call.1} parent=1 // loop_header
      %s17 = sphi 0, %s21
      %p18 = scmp.ge.s32.totalorder %s17, 4
      %s24 = sphi 0, %s43
      %s25 = sphi 0, %s39
      %s26 = sphi 0, %s35
      %s27 = sphi 0, %s24
      %s28 = sphi 0, %s25
      %s29 = sphi 0, %s26
      %s30 = sphi 0, %s27
      %s31 = sphi 0, %s28
      %s32 = sphi 0, %s29
      %s50 = sphi 0, %s52
      %s53 = sphi 0, %s50
      %s54 = sphi 0, %s53
      %s70 = sphi 0, %s54
      %s80 = sphi 0, %s82
      %s83 = sphi 0, %s80
      %s84 = sphi 0, %s83
      %s100 = sphi 0, %s84
      %s108 = sphi 0, %s110
      %s111 = sphi 0, %s108
      %s112 = sphi 0, %s111
      %s128 = sphi 0, %s112
    $region4: #{tpu_custom_call.1} parent=1 // loop_header_branch
      %20 = sbr.rel (%p18) target = $region8
    $region5: #{tpu_custom_call.1} parent=1 // loop_body
      %s22 = ssub.s32 %s17, 1
      %s23 = ssub.s32 %s17, 2
      %s33 = sadd.s32 1, %s26
      %p34 = scmp.ge.s32.totalorder %s33, 1
      %s35 = scalar_select %p34, 0, %s33
      %s36 = sadd.s32 1, %s25
      %s37 = scalar_select %p34, %s36, %s25
      %p38 = scmp.ge.s32.totalorder %s37, 1
      %s39 = scalar_select %p38, 0, %s37
      %s40 = sadd.s32 1, %s24
      %s41 = scalar_select %p38, %s40, %s24
      %p42 = scmp.ge.s32.totalorder %s41, 2
      %s43 = scalar_select %p42, 0, %s41
      %s44 = sadd.s32 %s25, %s26
      %s45 = sadd.s32 %s39, %s35
      %s46 = ssub.s32 %s24, %s43
      %s47 = ssub.s32 %s44, %s45
      %s48 = sor.u32 %s46, %s47
      %p49 = scmp.eq.s32.totalorder %s48, 0
      %s51 = sadd.s32 %s50, 1
      %s52 = scalar_select %p49, %s50, %s51
      %p55 = pneg %p49
      %p56 = scmp.eq.s32.totalorder %s17, 1
      %p57 = por %p55, %p56
      %p58 = scmp.ne.s32.totalorder %s50, %s53
      %p59 = scmp.eq.s32.totalorder %s17, 0
      %p60 = por %p58, %p59
      %p61 = scmp.ne.s32.totalorder %s50, %s53
      %p62 = scmp.eq.s32.totalorder %s22, 1
      %p63 = por %p61, %p62
      %p64 = scmp.ne.s32.totalorder %s53, %s54
      %p65 = scmp.eq.s32.totalorder %s22, 0
      %p66 = por %p64, %p65
      %p67 = scmp.ne.s32.totalorder %s53, %s54
      %p68 = scmp.eq.s32.totalorder %s23, 1
      %p69 = por %p67, %p68
      %p71 = scmp.ne.s32.totalorder %s54, %s70
      %p72 = scmp.eq.s32.totalorder %s23, 0
      %p73 = por %p71, %p72
      %s74 = sadd.s32 %s25, %s26
      %s75 = sadd.s32 %s39, %s35
      %s76 = ssub.s32 %s24, %s43
      %s77 = ssub.s32 %s74, %s75
      %s78 = sor.u32 %s76, %s77
      %p79 = scmp.eq.s32.totalorder %s78, 0
      %s81 = sadd.s32 %s80, 1
      %s82 = scalar_select %p79, %s80, %s81
      %p85 = pneg %p79
      %p86 = scmp.eq.s32.totalorder %s17, 1
      %p87 = por %p85, %p86
      %p88 = scmp.ne.s32.totalorder %s80, %s83
      %p89 = scmp.eq.s32.totalorder %s17, 0
      %p90 = por %p88, %p89
      %p91 = scmp.ne.s32.totalorder %s80, %s83
      %p92 = scmp.eq.s32.totalorder %s22, 1
      %p93 = por %p91, %p92
      %p94 = scmp.ne.s32.totalorder %s83, %s84
      %p95 = scmp.eq.s32.totalorder %s22, 0
      %p96 = por %p94, %p95
      %p97 = scmp.ne.s32.totalorder %s83, %s84
      %p98 = scmp.eq.s32.totalorder %s23, 1
      %p99 = por %p97, %p98
      %p101 = scmp.ne.s32.totalorder %s84, %s100
      %p102 = scmp.eq.s32.totalorder %s23, 0
      %p103 = por %p101, %p102
      %s104 = ssub.s32 %s24, %s43
      %s105 = ssub.s32 %s25, %s39
      %s106 = sor.u32 %s104, %s105
      %p107 = scmp.eq.s32.totalorder %s106, 0
      %s109 = sadd.s32 %s108, 1
      %s110 = scalar_select %p107, %s108, %s109
      %p113 = pneg %p107
      %p114 = scmp.eq.s32.totalorder %s17, 1
      %p115 = por %p113, %p114
      %p116 = scmp.ne.s32.totalorder %s108, %s111
      %p117 = scmp.eq.s32.totalorder %s17, 0
      %p118 = por %p116, %p117
      %p119 = scmp.ne.s32.totalorder %s108, %s111
      %p120 = scmp.eq.s32.totalorder %s22, 1
      %p121 = por %p119, %p120
      %p122 = scmp.ne.s32.totalorder %s111, %s112
      %p123 = scmp.eq.s32.totalorder %s22, 0
      %p124 = por %p122, %p123
      %p125 = scmp.ne.s32.totalorder %s111, %s112
      %p126 = scmp.eq.s32.totalorder %s23, 1
      %p127 = por %p125, %p126
      %p129 = scmp.ne.s32.totalorder %s112, %s128
      %p130 = scmp.eq.s32.totalorder %s23, 0
      %p131 = por %p129, %p130
      %p132 = scmp.le.s32.totalorder 1, %s17
      %p133 = scmp.lt.s32.totalorder %s17, 3
      %p134 = pnand %p132, %p133
      %p135 = pneg %p134
      // Predicated region
      $region9: #{tpu_custom_call.1} parent=5 // pred_check
        _
      $region10: #{tpu_custom_call.1} parent=5 // pred_check_branch
        %137 = sbr.rel (%p134) target = $region12
      $region11: #{tpu_custom_call.1} parent=5 // pred_region
        %s138 = ssub.s32 %s17, 1
      $region12: #{tpu_custom_call.1} parent=5 // pred_fallthru
        _
      %p139 = scmp.lt.s32.totalorder %s17, 2
      // Predicated region
      $region13: #{tpu_custom_call.1} parent=5 // pred_check
        %p140 = pneg %p139
      $region14: #{tpu_custom_call.1} parent=5 // pred_check_branch
        %142 = sbr.rel (%p140) target = $region16
      $region15: #{tpu_custom_call.1} parent=5 // pred_region
        // Predicated region
        $region17: #{tpu_custom_call.1} parent=15 // pred_check
          %p143 = pneg %p60
        $region18: #{tpu_custom_call.1} parent=15 // pred_check_branch
          %145 = sbr.rel (%p143) target = $region20
        $region19: #{tpu_custom_call.1} parent=15 // pred_region
          %s146 = sand.u32 %s50, 1
          %s147 = scalar_lea.sflag [#allocation3], %s146
          %s148 = sand.u32 %s50, 1
          %s149 = smul.addr %s148, 8
          %s150 = scalar_lea.vmem [#allocation2], %s149
          %s151 = sadd.s32 %s25, %s26
          %s152 = smul.u32 2, %s151
          %154 = vsyncadd %s147, 0
          %s155 = smul.addr %s24, 2
          %s156 = sadd.s32 %s152, %s155
          %s157 = smul.addr %s156, 4
          %s158 = scalar_lea.hbm %s0, %s157
          %s160 = sshll.u32 %s158, 4
          %s161 = int_to_ptr.hbm [resolvable:$true] %s160
          %s162 = sshll.u32 %s150, 4
          %s163 = int_to_ptr.vmem [resolvable:$true] %s162
          %165 = dma.hbm_to_vmem [thread:$0]  %s161, 128, %s163, %s147
        $region20: #{tpu_custom_call.1} parent=15 // pred_fallthru
          _
        // Predicated region
        $region21: #{tpu_custom_call.1} parent=15 // pred_check
          %p166 = pneg %p90
        $region22: #{tpu_custom_call.1} parent=15 // pred_check_branch
          %168 = sbr.rel (%p166) target = $region24
        $region23: #{tpu_custom_call.1} parent=15 // pred_region
          %s169 = sand.u32 %s80, 1
          %s170 = scalar_lea.sflag [#allocation6], %s169
          %s171 = sand.u32 %s80, 1
          %s172 = smul.addr %s171, 2
          %s173 = scalar_lea.vmem [#allocation5], %s172
          %s174 = sadd.s32 %s25, %s26
          %s175 = smul.u32 2, %s174
          %177 = vsyncadd %s170, 0
          %s178 = smul.addr %s24, 2
          %s179 = sadd.s32 %s175, %s178
          %s180 = scalar_lea.hbm %s1, %s179
          %s182 = sshll.u32 %s180, 4
          %s183 = int_to_ptr.hbm [resolvable:$true] %s182
          %s184 = sshll.u32 %s173, 4
          %s185 = int_to_ptr.vmem [resolvable:$true] %s184
          %187 = dma.hbm_to_vmem [thread:$0]  %s183, 32, %s185, %s170
        $region24: #{tpu_custom_call.1} parent=15 // pred_fallthru
          _
      $region16: #{tpu_custom_call.1} parent=5 // pred_fallthru
        _
      %p188 = scmp.le.s32.totalorder 1, %s17
      %p189 = scmp.lt.s32.totalorder %s17, 3
      %p190 = pnand %p188, %p189
      %p191 = pneg %p190
      // Predicated region
      $region25: #{tpu_custom_call.1} parent=5 // pred_check
        _
      $region26: #{tpu_custom_call.1} parent=5 // pred_check_branch
        %193 = sbr.rel (%p190) target = $region28
      $region27: #{tpu_custom_call.1} parent=5 // pred_region
        %s194 = ssub.s32 %s17, 1
        %s195 = sand.u32 %s53, 1
        %s196 = scalar_lea.sflag [#allocation3], %s195
        %s197 = sand.u32 %s53, 1
        %s198 = smul.addr %s197, 8
        %s199 = scalar_lea.vmem [#allocation2], %s198
        // Predicated region
        $region29: #{tpu_custom_call.1} parent=27 // pred_check
          %p200 = pneg %p66
        $region30: #{tpu_custom_call.1} parent=27 // pred_check_branch
          %202 = sbr.rel (%p200) target = $region32
        $region31: #{tpu_custom_call.1} parent=27 // pred_region
          %204 = dma.done %s196, 128
        $region32: #{tpu_custom_call.1} parent=27 // pred_fallthru
          _
        %s205 = sand.u32 %s83, 1
        %s206 = scalar_lea.sflag [#allocation6], %s205
        %s207 = sand.u32 %s83, 1
        %s208 = smul.addr %s207, 2
        %s209 = scalar_lea.vmem [#allocation5], %s208
        // Predicated region
        $region33: #{tpu_custom_call.1} parent=27 // pred_check
          %p210 = pneg %p96
        $region34: #{tpu_custom_call.1} parent=27 // pred_check_branch
          %212 = sbr.rel (%p210) target = $region36
        $region35: #{tpu_custom_call.1} parent=27 // pred_region
          %214 = dma.done %s206, 32
        $region36: #{tpu_custom_call.1} parent=27 // pred_fallthru
          _
        %s215 = sand.u32 %s53, 1
        %s216 = scalar_lea.sflag [#allocation3], %s215
        %s217 = sand.u32 %s53, 1
        %s218 = smul.addr %s217, 8
        %s219 = scalar_lea.vmem [#allocation2], %s218
        %p220 = pneg %p66
        %p221 = pneg %p63
        %s222 = sand.u32 %s83, 1
        %s223 = scalar_lea.sflag [#allocation6], %s222
        %s224 = sand.u32 %s83, 1
        %s225 = smul.addr %s224, 2
        %s226 = scalar_lea.vmem [#allocation5], %s225
        %p227 = pneg %p96
        %p228 = pneg %p93
        %p229 = pneg %p124
        %p230 = pneg %p121
        %s231 = sand.u32 %s111, 1
        %s232 = scalar_lea.sflag [#allocation4], %s231
        %s233 = sand.u32 %s111, 1
        %s234 = scalar_lea.vmem [#allocation7], %s233
        %s235 = sadd.s32 %s28, %s29
        %s236 = smul.u32 2, %s235
        %s237 = sadd.s32 %s28, %s29
        %s238 = smul.u32 2, %s237
        %p239 = scmp.eq.s32.totalorder %s29, 0
        // Predicated region
        $region37: #{tpu_custom_call.1} parent=27 // pred_check
          %p240 = pneg %p239
        $region38: #{tpu_custom_call.1} parent=27 // pred_check_branch
          %242 = sbr.rel (%p240) target = $region40
        $region39: #{tpu_custom_call.1} parent=27 // pred_region
          %243 = vst [vmem:[%s234] sm:$0x1] 0.0
        $region40: #{tpu_custom_call.1} parent=27 // pred_fallthru
          _
        %v244 = vld [vmem:[%s199] sm:$0xff]
        %v245 = vld [vmem:[%s209] sm:$0x3]
        %247 = vst [vmem:[#allocation1] ss:$2 sm:$0xff] %v244
        %v248 = vld.sshfl [vmem:[#allocation1] sm:$0xff pattern:$0x75316420]
        %v249 = vld.sshfl [vmem:[#allocation1 + $0x8] sm:$0xff pattern:$0x75316420]
        %vm252 = vcmask 1043456
        %v253 = vsel %vm252, %v248, -inf
        %v254 = vrot.slane %v253, 4
        %v255 = vmax.f32 %v253, %v254
        %v256 = vrot.slane %v255, 2
        %v257 = vmax.f32 %v255, %v256
        %v258 = vrot.slane %v257, 1
        %v259 = vmax.f32 %v257, %v258
        %v260 = vsel %vm252, %v249, -inf
        %v261 = vrot.slane %v260, 4
        %v262 = vmax.f32 %v260, %v261
        %v263 = vrot.slane %v262, 2
        %v264 = vmax.f32 %v262, %v263
        %v265 = vrot.slane %v264, 1
        %v266 = vmax.f32 %v264, %v265
        %v269 = vrot.slane %v266, 4
        %v270 = vsel %vm252, %v259, %v269
        %v272 = vsub.f32 %v244, %v270
        %v273 = vmul.f32 %v272, 1.442695
        %v274 = vpow.pop %v273
        %276 = vst [vmem:[#allocation1] ss:$2 sm:$0xff] %v274
        %v277 = vld.sshfl [vmem:[#allocation1] sm:$0xff pattern:$0x75316420]
        %v278 = vld.sshfl [vmem:[#allocation1 + $0x8] sm:$0xff pattern:$0x75316420]
        %v281 = vsel %vm252, %v277, 0.0
        %v282 = vrot.slane %v281, 4
        %v283 = vadd.f32 %v281, %v282
        %v284 = vrot.slane %v283, 2
        %v285 = vadd.f32 %v283, %v284
        %v286 = vrot.slane %v285, 1
        %v287 = vadd.f32 %v285, %v286
        %v288 = vsel %vm252, %v278, 0.0
        %v289 = vrot.slane %v288, 4
        %v290 = vadd.f32 %v288, %v289
        %v291 = vrot.slane %v290, 2
        %v292 = vadd.f32 %v290, %v291
        %v293 = vrot.slane %v292, 1
        %v294 = vadd.f32 %v292, %v293
        %v295 = vlaneseq
        %v296 = vshrl.u32 %v295, 7
        %v297 = vperm.slane %v245, 0
        %v298 = vperm.slane %v245, 1
        %vm299 = vcmp.eq.s32.totalorder %v296, %v297
        %vm300 = vcmp.eq.s32.totalorder %v296, %v298
        %301 = vst [vmem:[#allocation1] ss:$2 sm:$0xff] %v244
        %v302 = vld.sshfl [vmem:[#allocation1] sm:$0xff pattern:$0x75316420]
        %v303 = vld.sshfl [vmem:[#allocation1 + $0x8] sm:$0xff pattern:$0x75316420]
        %v306 = vsel %vm299, %v302, -inf
        %v307 = vsel %vm300, %v303, -inf
        %v308 = vsel %vm252, %v306, -inf
        %v309 = vrot.slane %v308, 4
        %v310 = vmax.f32 %v308, %v309
        %v311 = vrot.slane %v310, 2
        %v312 = vmax.f32 %v310, %v311
        %v313 = vrot.slane %v312, 1
        %v314 = vmax.f32 %v312, %v313
        %v315 = vsel %vm252, %v307, -inf
        %v316 = vrot.slane %v315, 4
        %v317 = vmax.f32 %v315, %v316
        %v318 = vrot.slane %v317, 2
        %v319 = vmax.f32 %v317, %v318
        %v320 = vrot.slane %v319, 1
        %v321 = vmax.f32 %v319, %v320
        %v322 = vsub.f32 %v314, %v259
        %v323 = vsub.f32 %v321, %v266
        %v324 = vmul.f32 %v322, 1.442695
        %v325 = vpow.pop %v324
        %v326 = vmul.f32 %v323, 1.442695
        %v327 = vpow.pop %v326
        %v328 = vrcp.pop %v287
        %v329 = vrcp.pop %v294
        %v330 = vmul.f32 %v325, %v328
        %v331 = vmul.f32 %v327, %v329
        %v332 = vsub.f32 1.0, %v330
        %v333 = vsub.f32 1.0, %v331
        %v334 = vmul.f32 %v332, 0.5
        %v335 = vmul.f32 %v333, 0.5
        %v336 = vld [vmem:[%s234] sm:$0x1]
        %vm337 = vcmask 1040384
        %v338 = vsel %vm337, %v334, 0.0
        %v339 = vsel %vm337, %v335, 0.0
        %v340 = vadd.f32 %v338, %v339
        %341 = vadd.xlane.f32.xlu0 %v340
        %v342 = vpop.xlane.xlu0 %341
        %v343 = vrot.slane %v342, 4
        %v344 = vadd.f32 %v342, %v343
        %v345 = vrot.slane %v344, 2
        %v346 = vadd.f32 %v344, %v345
        %v347 = vrot.slane %v346, 1
        %v348 = vadd.f32 %v346, %v347
        %s349 = vtos %v348
        %v350 = vstv %s349
        %v351 = vadd.f32 %v336, %v350
        %352 = vst [vmem:[%s234] sm:$0x1] %v351
        %s353 = sand.u32 %s111, 1
        %s354 = scalar_lea.sflag [#allocation4], %s353
        %s355 = sand.u32 %s111, 1
        %s356 = scalar_lea.vmem [#allocation7], %s355
        // Predicated region
        $region41: #{tpu_custom_call.1} parent=27 // pred_check
          %p357 = pneg %p121
        $region42: #{tpu_custom_call.1} parent=27 // pred_check_branch
          %359 = sbr.rel (%p357) target = $region44
        $region43: #{tpu_custom_call.1} parent=27 // pred_region
          %361 = vsyncadd %s354, 0
          %s362 = sadd.s32 %s28, %s27
          %s363 = scalar_lea.hbm %s2, %s362
          %s365 = sshll.u32 %s356, 4
          %s366 = int_to_ptr.vmem [resolvable:$true] %s365
          %s367 = sshll.u32 %s363, 4
          %s368 = int_to_ptr.hbm [resolvable:$true] %s367
          %370 = dma.vmem_to_hbm [thread:$0]  %s366, 16, %s368, %s354
        $region44: #{tpu_custom_call.1} parent=27 // pred_fallthru
          _
      $region28: #{tpu_custom_call.1} parent=5 // pred_fallthru
        _
      %p371 = scmp.le.s32.totalorder 2, %s17
      // Predicated region
      $region45: #{tpu_custom_call.1} parent=5 // pred_check
        %p372 = pneg %p371
      $region46: #{tpu_custom_call.1} parent=5 // pred_check_branch
        %374 = sbr.rel (%p372) target = $region48
      $region47: #{tpu_custom_call.1} parent=5 // pred_region
        %s375 = ssub.s32 %s17, 2
        // Predicated region
        $region49: #{tpu_custom_call.1} parent=47 // pred_check
          %p376 = pneg %p127
        $region50: #{tpu_custom_call.1} parent=47 // pred_check_branch
          %378 = sbr.rel (%p376) target = $region52
        $region51: #{tpu_custom_call.1} parent=47 // pred_region
          %s379 = sand.u32 %s112, 1
          %s380 = scalar_lea.sflag [#allocation4], %s379
          %s381 = sand.u32 %s112, 1
          %s382 = scalar_lea.vmem [#allocation7], %s381
          %384 = dma.done %s380, 16
        $region52: #{tpu_custom_call.1} parent=47 // pred_fallthru
          _
      $region48: #{tpu_custom_call.1} parent=5 // pred_fallthru
        _
    $region6: #{tpu_custom_call.1} parent=1 // loop_footer
      %s21 = sadd.s32 1, %s17
    $region7: #{tpu_custom_call.1} parent=1 // loop_footer_branch
      %16 = sbr.rel target = $region3
    $region8: #{tpu_custom_call.1} parent=1 // loop_exit
      _
    %385 = vsyncpa [#allocation3], 1
    %s386 = scalar_lea.sflag [#allocation3], 1
    %387 = vsyncpa %s386, 1
    %388 = vsyncpa [#allocation6], 1
    %s389 = scalar_lea.sflag [#allocation6], 1
    %390 = vsyncpa %s389, 1
    %391 = vsyncpa [#allocation4], 1
    %s392 = scalar_lea.sflag [#allocation4], 1
    %393 = vsyncpa %s392, 1

</llo_original>
